<compile_context>
chip_gen: v7x
topology: tpu7x:2x2x1
jax: 0.10.0
libtpu: 0.0.40
codegen_flags: <defaults>
</compile_context>

<pallas_src>
import functools

import jax
import jax.numpy as jnp
from jax import lax
from jax.experimental import pallas as pl
from jax.experimental.pallas import tpu as pltpu

ENCODED_DIM = 2
LANE = 128                 # TPU lane width; narrow dims are zero-padded to this
H1, H2, H3 = 256, 128, 64
B123_WIDTH = H1 + H2 + LANE        # 256 + 128 + 128 = 512 (fc1..fc3 biases, packed)
OUT_PAD = 8                        # fc4 out-dims padded to one sublane group


def _encoder_kernel(x_ref, w1_ref, w2_ref, w3_ref, w4t_ref, b_ref, b4_ref, o_ref):
    # One batch tile per grid step. Weights/biases have constant index maps so
    # they are DMA'd once and stay resident in VMEM; x / out are streamed.
    x = x_ref[...].astype(jnp.bfloat16)                    # bf16 into the MXU

    # fc1: input_dim -> 256, ReLU   (bias add / ReLU in f32 on the VPU)
    h = jnp.dot(x, w1_ref[...], preferred_element_type=jnp.float32)
    h = jnp.maximum(h + b_ref[:, 0:256], 0.0)

    # fc2: 256 -> 128, ReLU
    h = jnp.dot(h.astype(jnp.bfloat16), w2_ref[...],
                preferred_element_type=jnp.float32)
    h = jnp.maximum(h + b_ref[:, 256:384], 0.0)

    # fc3: 128 -> 64 (zero-padded to 128 lanes), ReLU
    h = jnp.dot(h.astype(jnp.bfloat16), w3_ref[...],
                preferred_element_type=jnp.float32)
    h = jnp.maximum(h + b_ref[:, 384:512], 0.0)            # padded lanes stay exactly 0

    # fc4, transposed: (OUT_PAD, 128) x (tile_b, 128)^T -> (OUT_PAD, tile_b).
    # Contracting both operands on their last dim is the standard q@k^T MXU
    # pattern; the result already has the batch along lanes, so the store is
    # lane-dense (8 B/row) instead of a 128-lane-padded f32 row (512 B/row).
    ot = lax.dot_general(w4t_ref[...], h.astype(jnp.bfloat16),
                         (((1,), (1,)), ((), ())),
                         preferred_element_type=jnp.float32)
    o_ref[...] = (ot[:ENCODED_DIM, :] + b4_ref[...]).astype(o_ref.dtype)


def prepare_params(params):
    """Pack f32 (in, out)-layout params for the kernel.
       - weights cast to bf16 (MXU-native, halves weight DMA bytes)
       - fc3 weight padded to (128, 128) with zeros
       - fc4 weight stored TRANSPOSED and padded to (OUT_PAD, 128)
       - fc1..fc3 biases zero-padded to lane multiples and packed into (1, 512) f32
       - fc4 bias kept as a (ENCODED_DIM, 1) f32 column (lane-broadcast in-kernel)
    Zero padding is exact: padded activations stay 0 through ReLU and meet zero
    rows/columns of the next weight, so the math is unchanged."""
    w1 = params["w1"].astype(jnp.bfloat16)                                    # (D, 256)
    w2 = params["w2"].astype(jnp.bfloat16)                                    # (256, 128)
    w3 = jnp.zeros((H2, LANE), jnp.bfloat16).at[:, :H3].set(
        params["w3"].astype(jnp.bfloat16))                                    # (128, 128)
    out_dim = params["w4"].shape[1]
    w4t = jnp.zeros((OUT_PAD, LANE), jnp.bfloat16).at[:out_dim, :H3].set(
        params["w4"].T.astype(jnp.bfloat16))                                  # (8, 128)

    def pad_b(b, n):
        return jnp.zeros((1, n), jnp.float32).at[:, :b.shape[1]].set(
            b.astype(jnp.float32))

    b123 = jnp.concatenate(
        [pad_b(params["b1"], H1), pad_b(params["b2"], H2),
         pad_b(params["b3"], LANE)], axis=1)                                  # (1, 512)
    b4 = params["b4"].astype(jnp.float32).reshape(out_dim, 1)                 # (2, 1)
    return (w1, w2, w3, w4t, b123, b4)


@functools.partial(jax.jit, static_argnames=("tile_b",))
def encoder_forward(x, packed_params, tile_b=1024):
    """x: (B, input_dim) float32 or bfloat16.  packed_params: prepare_params() output.
    Returns (B, ENCODED_DIM) float32."""
    w1, w2, w3, w4t, b123, b4 = packed_params
    B, D = x.shape

    # Large tiles amortize per-step pipeline overhead (~0.35us); for small
    # batches cap the tile so the grid keeps >=2 steps (feeds both v7x TCs),
    # but never go below 256 rows. No batch padding: Pallas masks the ragged
    # last block and its outputs are never written back.
    half = pl.cdiv(pl.cdiv(B, 2), 256) * 256
    tile = max(256, min(tile_b, half))
    grid = (pl.cdiv(B, tile),)

    resident = lambda a: pl.BlockSpec(a.shape, lambda i: (0, 0))

    flops = 2 * B * (D * H1 + H1 * H2 + H2 * H3 + H3 * ENCODED_DIM)
    bytes_accessed = int(
        B * (D * x.dtype.itemsize + ENCODED_DIM * 4)
        + sum(int(a.size) * a.dtype.itemsize for a in (w1, w2, w3, w4t, b123, b4)))

    out = pl.pallas_call(
        _encoder_kernel,
        out_shape=jax.ShapeDtypeStruct((ENCODED_DIM, B), jnp.float32),
        grid=grid,
        in_specs=[
            pl.BlockSpec((tile, D), lambda i: (i, 0)),     # x: streamed batch tiles
            resident(w1), resident(w2), resident(w3), resident(w4t),
            resident(b123), resident(b4),
        ],
        # Transposed, lane-dense output: batch along the 128-lane axis.
        out_specs=pl.BlockSpec((ENCODED_DIM, tile), lambda i: (0, i)),
        compiler_params=pltpu.CompilerParams(
            dimension_semantics=("parallel",),   # shard batch tiles across TCs on v7x
        ),
        cost_estimate=pl.CostEstimate(
            flops=flops, transcendentals=0, bytes_accessed=bytes_accessed),
    )(x, w1, w2, w3, w4t, b123, b4)

    return out.T                                           # (B, ENCODED_DIM)


def init_params(key, input_dim, encoded_dim):
    """Deterministic init mimicking PyTorch nn.Linear default (uniform +/- 1/sqrt(fan_in)).
    Weights stored as (in_features, out_features), f32."""
    dims = [(input_dim, H1), (H1, H2), (H2, H3), (H3, encoded_dim)]
    params = {}
    for i, (fan_in, fan_out) in enumerate(dims, start=1):
        key, kw, kb = jax.random.split(key, 3)
        bound = 1.0 / (fan_in ** 0.5)
        params[f"w{i}"] = jax.random.uniform(
            kw, (fan_in, fan_out), jnp.float32, -bound, bound)
        params[f"b{i}"] = jax.random.uniform(
            kb, (1, fan_out), jnp.float32, -bound, bound)
    return params


def _reference(x, params):
    """Plain-JAX reference mirroring the kernel's bf16-into-MXU / f32-accumulate numerics."""
    h = x
    for i in range(1, 5):
        w = params[f"w{i}"].astype(jnp.bfloat16)
        h = jnp.dot(h.astype(jnp.bfloat16), w, preferred_element_type=jnp.float32)
        h = h + params[f"b{i}"]
        if i < 4:
            h = jnp.maximum(h, 0.0)
    return h


if __name__ == "__main__":
    key = jax.random.PRNGKey(0)
    k_x, k_p = jax.random.split(key)

    batch = 500          # not a tile multiple -> exercises the ragged last block + 2 grid steps
    input_dim = 32

    x = jax.random.normal(k_x, (batch, input_dim), jnp.float32)
    params = init_params(k_p, input_dim, ENCODED_DIM)
    packed = prepare_params(params)

    out = encoder_forward(x, packed)
    out = jax.block_until_ready(out)

    ref = _reference(x, params)
    assert out.shape == (batch, ENCODED_DIM)
    assert jnp.allclose(out, ref, atol=1e-3, rtol=1e-2), (
        float(jnp.max(jnp.abs(out - ref))))

    print("KERNEL_OK")
</pallas_src>

<mosaic_0001>
module attributes {stable_mosaic.version = 11 : i64} {
  func.func @_encoder_kernel(%arg0: i32, %arg1: memref<256x32xf32, #tpu.memory_space<vmem>>, %arg2: memref<32x256xbf16, #tpu.memory_space<vmem>>, %arg3: memref<256x128xbf16, #tpu.memory_space<vmem>>, %arg4: memref<128x128xbf16, #tpu.memory_space<vmem>>, %arg5: memref<8x128xbf16, #tpu.memory_space<vmem>>, %arg6: memref<1x512xf32, #tpu.memory_space<vmem>>, %arg7: memref<2x1xf32, #tpu.memory_space<vmem>>, %arg8: memref<2x256xf32, #tpu.memory_space<vmem>>) attributes {dimension_semantics = [#tpu.dimension_semantics<parallel>], iteration_bounds = array<i64: 2>, scalar_prefetch = 0 : i64, scratch_operands = 0 : i64, tpu.core_type = #tpu.core_type<tc>, window_params = [{transform_indices = @transform_0, window_bounds = array<i64: 256, 32>}, {pipeline_mode = #tpu.pipeline_mode<synchronous>, transform_indices = @transform_1, window_bounds = array<i64: 32, 256>}, {pipeline_mode = #tpu.pipeline_mode<synchronous>, transform_indices = @transform_2, window_bounds = array<i64: 256, 128>}, {pipeline_mode = #tpu.pipeline_mode<synchronous>, transform_indices = @transform_3, window_bounds = array<i64: 128, 128>}, {pipeline_mode = #tpu.pipeline_mode<synchronous>, transform_indices = @transform_4, window_bounds = array<i64: 8, 128>}, {pipeline_mode = #tpu.pipeline_mode<synchronous>, transform_indices = @transform_5, window_bounds = array<i64: 1, 512>}, {pipeline_mode = #tpu.pipeline_mode<synchronous>, transform_indices = @transform_6, window_bounds = array<i64: 2, 1>}, {transform_indices = @transform_7, window_bounds = array<i64: 2, 256>}]} {
    %c0 = arith.constant 0 : index
    %c0_0 = arith.constant 0 : index
    %0 = vector.load %arg1[%c0, %c0_0] : memref<256x32xf32, #tpu.memory_space<vmem>>, vector<256x32xf32>
    %1 = arith.truncf %0 : vector<256x32xf32> to vector<256x32xbf16>
    %c0_1 = arith.constant 0 : index
    %c0_2 = arith.constant 0 : index
    %2 = vector.load %arg2[%c0_1, %c0_2] : memref<32x256xbf16, #tpu.memory_space<vmem>>, vector<32x256xbf16>
    %cst = arith.constant dense<0.000000e+00> : vector<256x256xf32>
    %3 = tpu.matmul %1, %2, %cst {dimension_numbers = #tpu.dot_dimension_numbers<[1], [0], [0], [1], [0, 0, 1, 1], [], []>} : vector<256x32xbf16>, vector<32x256xbf16>, vector<256x256xf32> -> vector<256x256xf32>
    %c0_3 = arith.constant 0 : index
    %c0_4 = arith.constant 0 : index
    %4 = vector.load %arg6[%c0_3, %c0_4] : memref<1x512xf32, #tpu.memory_space<vmem>>, vector<1x256xf32>
    %5 = vector.broadcast %4 : vector<1x256xf32> to vector<256x256xf32>
    %6 = arith.addf %3, %5 : vector<256x256xf32>
    %cst_5 = arith.constant 0.000000e+00 : f32
    %7 = vector.broadcast %cst_5 : f32 to vector<256x256xf32>
    %8 = arith.maximumf %6, %7 : vector<256x256xf32>
    %9 = arith.truncf %8 : vector<256x256xf32> to vector<256x256xbf16>
    %c0_6 = arith.constant 0 : index
    %c0_7 = arith.constant 0 : index
    %10 = vector.load %arg3[%c0_6, %c0_7] : memref<256x128xbf16, #tpu.memory_space<vmem>>, vector<256x128xbf16>
    %cst_8 = arith.constant dense<0.000000e+00> : vector<256x128xf32>
    %11 = tpu.matmul %9, %10, %cst_8 {dimension_numbers = #tpu.dot_dimension_numbers<[1], [0], [0], [1], [0, 0, 1, 1], [], []>} : vector<256x256xbf16>, vector<256x128xbf16>, vector<256x128xf32> -> vector<256x128xf32>
    %c0_9 = arith.constant 0 : index
    %c256 = arith.constant 256 : index
    %12 = vector.load %arg6[%c0_9, %c256] : memref<1x512xf32, #tpu.memory_space<vmem>>, vector<1x128xf32>
    %13 = vector.broadcast %12 : vector<1x128xf32> to vector<256x128xf32>
    %14 = arith.addf %11, %13 : vector<256x128xf32>
    %cst_10 = arith.constant 0.000000e+00 : f32
    %15 = vector.broadcast %cst_10 : f32 to vector<256x128xf32>
    %16 = arith.maximumf %14, %15 : vector<256x128xf32>
    %17 = arith.truncf %16 : vector<256x128xf32> to vector<256x128xbf16>
    %c0_11 = arith.constant 0 : index
    %c0_12 = arith.constant 0 : index
    %18 = vector.load %arg4[%c0_11, %c0_12] : memref<128x128xbf16, #tpu.memory_space<vmem>>, vector<128x128xbf16>
    %cst_13 = arith.constant dense<0.000000e+00> : vector<256x128xf32>
    %19 = tpu.matmul %17, %18, %cst_13 {dimension_numbers = #tpu.dot_dimension_numbers<[1], [0], [0], [1], [0, 0, 1, 1], [], []>} : vector<256x128xbf16>, vector<128x128xbf16>, vector<256x128xf32> -> vector<256x128xf32>
    %c0_14 = arith.constant 0 : index
    %c384 = arith.constant 384 : index
    %20 = vector.load %arg6[%c0_14, %c384] : memref<1x512xf32, #tpu.memory_space<vmem>>, vector<1x128xf32>
    %21 = vector.broadcast %20 : vector<1x128xf32> to vector<256x128xf32>
    %22 = arith.addf %19, %21 : vector<256x128xf32>
    %cst_15 = arith.constant 0.000000e+00 : f32
    %23 = vector.broadcast %cst_15 : f32 to vector<256x128xf32>
    %24 = arith.maximumf %22, %23 : vector<256x128xf32>
    %c0_16 = arith.constant 0 : index
    %c0_17 = arith.constant 0 : index
    %25 = vector.load %arg5[%c0_16, %c0_17] : memref<8x128xbf16, #tpu.memory_space<vmem>>, vector<8x128xbf16>
    %26 = arith.truncf %24 : vector<256x128xf32> to vector<256x128xbf16>
    %cst_18 = arith.constant dense<0.000000e+00> : vector<8x256xf32>
    %27 = tpu.matmul %25, %26, %cst_18 {dimension_numbers = #tpu.dot_dimension_numbers<[1], [1], [0], [0], [0, 0, 1, 0], [], []>} : vector<8x128xbf16>, vector<256x128xbf16>, vector<8x256xf32> -> vector<8x256xf32>
    %28 = vector.extract_strided_slice %27 {offsets = [0, 0], sizes = [2, 256], strides = [1, 1]} : vector<8x256xf32> to vector<2x256xf32>
    %c0_19 = arith.constant 0 : index
    %c0_20 = arith.constant 0 : index
    %29 = vector.load %arg7[%c0_19, %c0_20] : memref<2x1xf32, #tpu.memory_space<vmem>>, vector<2x1xf32>
    %30 = vector.broadcast %29 : vector<2x1xf32> to vector<2x256xf32>
    %31 = arith.addf %28, %30 : vector<2x256xf32>
    %c0_21 = arith.constant 0 : index
    %c0_22 = arith.constant 0 : index
    %32 = vector.load %arg8[%c0_21, %c0_22] : memref<2x256xf32, #tpu.memory_space<vmem>>, vector<2x256xf32>
    tpu.vector_store %arg8[%c0_21, %c0_22], %31 {strides = array<i32>} : memref<2x256xf32, #tpu.memory_space<vmem>>, vector<2x256xf32>,
    return
  }
  func.func @transform_0(%arg0: i32) -> (i32, i32) {
    %c0_i32 = arith.constant 0 : i32
    %c0_i32_0 = arith.constant 0 : i32
    return %arg0, %c0_i32 : i32, i32
  }
  func.func @transform_1(%arg0: i32) -> (i32, i32) {
    %c0_i32 = arith.constant 0 : i32
    %c0_i32_0 = arith.constant 0 : i32
    %c0_i32_1 = arith.constant 0 : i32
    return %c0_i32, %c0_i32_0 : i32, i32
  }
  func.func @transform_2(%arg0: i32) -> (i32, i32) {
    %c0_i32 = arith.constant 0 : i32
    %c0_i32_0 = arith.constant 0 : i32
    %c0_i32_1 = arith.constant 0 : i32
    return %c0_i32, %c0_i32_0 : i32, i32
  }
  func.func @transform_3(%arg0: i32) -> (i32, i32) {
    %c0_i32 = arith.constant 0 : i32
    %c0_i32_0 = arith.constant 0 : i32
    %c0_i32_1 = arith.constant 0 : i32
    return %c0_i32, %c0_i32_0 : i32, i32
  }
  func.func @transform_4(%arg0: i32) -> (i32, i32) {
    %c0_i32 = arith.constant 0 : i32
    %c0_i32_0 = arith.constant 0 : i32
    %c0_i32_1 = arith.constant 0 : i32
    return %c0_i32, %c0_i32_0 : i32, i32
  }
  func.func @transform_5(%arg0: i32) -> (i32, i32) {
    %c0_i32 = arith.constant 0 : i32
    %c0_i32_0 = arith.constant 0 : i32
    %c0_i32_1 = arith.constant 0 : i32
    return %c0_i32, %c0_i32_0 : i32, i32
  }
  func.func @transform_6(%arg0: i32) -> (i32, i32) {
    %c0_i32 = arith.constant 0 : i32
    %c0_i32_0 = arith.constant 0 : i32
    %c0_i32_1 = arith.constant 0 : i32
    return %c0_i32, %c0_i32_0 : i32, i32
  }
  func.func @transform_7(%arg0: i32) -> (i32, i32) {
    %c0_i32 = arith.constant 0 : i32
    %c0_i32_0 = arith.constant 0 : i32
    return %c0_i32, %arg0 : i32, i32
  }
}

</mosaic_0001>

<llo_original>
// kernel: encoder_forward.1
$region0: #{encoder_forward.1}
  #allocation0 [shape = 'u32[]', space=smem, size = 0x4, offset = 0x4, fixed_abs, tag = 'smem constant byte address 0x4 - core index']
  #allocation1 [shape = 'u32[144,128]{1,0:T(1,128)}', space=vmem, size = 0x12000, scoped, tag = 'internal scratch']
  %s0 = inlined_call_operand.vmem [shape: f32[500,32], index: 0, kind: input, shape index: {}]
  %s1 = inlined_call_operand.vmem [shape: bf16[32,256], index: 1, kind: input, shape index: {}]
  %s2 = inlined_call_operand.vmem [shape: bf16[256,128], index: 2, kind: input, shape index: {}]
  %s3 = inlined_call_operand.vmem [shape: bf16[128,128], index: 3, kind: input, shape index: {}]
  %s4 = inlined_call_operand.vmem [shape: bf16[8,128], index: 4, kind: input, shape index: {}]
  %s5 = inlined_call_operand.vmem [shape: f32[1,512], index: 5, kind: input, shape index: {}]
  %s6 = inlined_call_operand.vmem [shape: f32[2,1], index: 6, kind: input, shape index: {}]
  %s7 = inlined_call_operand.hbm [shape: f32[2,500], index: 7, kind: output, shape index: {}]
  %s8 = sld [smem:[#allocation0]]
  $region61: #{encoder_forward.1} parent=0
    _
  %s10 = ssub.s32 1, %s8
  %s11 = scalar_select 0, %s10, %s8
  $region1: #{encoder_forward.1} parent=0
    #allocation2 [shape = 'u8[4096]{0}', space=vmem, size = 0x1000, scoped, tag = 'output window, operand 0']
    #allocation3 [shape = 's32[2]{0}', space=sflag, size = 0x8, scoped, tag = 'scoped memory for encoder_forward.1']
    %12 = vsyncpa [#allocation3], 0
    %s13 = scalar_lea.sflag [#allocation3], 1
    %14 = vsyncpa %s13, 0
    loop: start=0, step=1, limit=4
    $region2: #{encoder_forward.1} parent=1 // loop_pre_header
      _
    $region3: #{encoder_forward.1} parent=1 // loop_header
      %s16 = sphi 0, %s20
      %p17 = scmp.ge.s32.totalorder %s16, 4
      %s26 = sphi 0, %s28
      %s29 = sphi 0, %s26
      %s30 = sphi 0, %s29
      %s46 = sphi 0, %s30
      %s50 = sphi 0, %s50
      %s52 = sphi 0, %s50
      %s53 = sphi 0, %s52
      %s67 = sphi 0, %s53
      %s71 = sphi 0, %s71
      %s73 = sphi 0, %s71
      %s74 = sphi 0, %s73
      %s88 = sphi 0, %s74
      %s92 = sphi 0, %s92
      %s94 = sphi 0, %s92
      %s95 = sphi 0, %s94
      %s109 = sphi 0, %s95
      %s113 = sphi 0, %s113
      %s115 = sphi 0, %s113
      %s116 = sphi 0, %s115
      %s130 = sphi 0, %s116
      %s134 = sphi 0, %s134
      %s136 = sphi 0, %s134
      %s137 = sphi 0, %s136
      %s151 = sphi 0, %s137
      %s155 = sphi 0, %s155
      %s157 = sphi 0, %s155
      %s158 = sphi 0, %s157
      %s172 = sphi 0, %s158
      %s178 = sphi 0, %s180
      %s181 = sphi 0, %s178
      %s182 = sphi 0, %s181
      %s198 = sphi 0, %s182
    $region4: #{encoder_forward.1} parent=1 // loop_header_branch
      %19 = sbr.rel (%p17) target = $region8
    $region5: #{encoder_forward.1} parent=1 // loop_body
      %s21 = ssub.s32 %s16, 1
      %s22 = ssub.s32 %s16, 2
      %s23 = sadd.s32 %s16, 1
      %s24 = ssub.s32 %s16, %s23
      %p25 = scmp.eq.s32.totalorder %s24, 0
      %s27 = sadd.s32 %s26, 1
      %s28 = scalar_select %p25, %s26, %s27
      %p31 = pneg %p25
      %p32 = scmp.eq.s32.totalorder %s16, 1
      %p33 = por %p31, %p32
      %p34 = scmp.ne.s32.totalorder %s26, %s29
      %p35 = scmp.eq.s32.totalorder %s16, 0
      %p36 = por %p34, %p35
      %p37 = scmp.ne.s32.totalorder %s26, %s29
      %p38 = scmp.eq.s32.totalorder %s21, 1
      %p39 = por %p37, %p38
      %p40 = scmp.ne.s32.totalorder %s29, %s30
      %p41 = scmp.eq.s32.totalorder %s21, 0
      %p42 = por %p40, %p41
      %p43 = scmp.ne.s32.totalorder %s29, %s30
      %p44 = scmp.eq.s32.totalorder %s22, 1
      %p45 = por %p43, %p44
      %p47 = scmp.ne.s32.totalorder %s30, %s46
      %p48 = scmp.eq.s32.totalorder %s22, 0
      %p49 = por %p47, %p48
      %s51 = sadd.s32 %s50, 1
      %p54 = scmp.eq.s32.totalorder %s16, 1
      %p55 = scmp.ne.s32.totalorder %s50, %s52
      %p56 = scmp.eq.s32.totalorder %s16, 0
      %p57 = por %p55, %p56
      %p58 = scmp.ne.s32.totalorder %s50, %s52
      %p59 = scmp.eq.s32.totalorder %s21, 1
      %p60 = por %p58, %p59
      %p61 = scmp.ne.s32.totalorder %s52, %s53
      %p62 = scmp.eq.s32.totalorder %s21, 0
      %p63 = por %p61, %p62
      %p64 = scmp.ne.s32.totalorder %s52, %s53
      %p65 = scmp.eq.s32.totalorder %s22, 1
      %p66 = por %p64, %p65
      %p68 = scmp.ne.s32.totalorder %s53, %s67
      %p69 = scmp.eq.s32.totalorder %s22, 0
      %p70 = por %p68, %p69
      %s72 = sadd.s32 %s71, 1
      %p75 = scmp.eq.s32.totalorder %s16, 1
      %p76 = scmp.ne.s32.totalorder %s71, %s73
      %p77 = scmp.eq.s32.totalorder %s16, 0
      %p78 = por %p76, %p77
      %p79 = scmp.ne.s32.totalorder %s71, %s73
      %p80 = scmp.eq.s32.totalorder %s21, 1
      %p81 = por %p79, %p80
      %p82 = scmp.ne.s32.totalorder %s73, %s74
      %p83 = scmp.eq.s32.totalorder %s21, 0
      %p84 = por %p82, %p83
      %p85 = scmp.ne.s32.totalorder %s73, %s74
      %p86 = scmp.eq.s32.totalorder %s22, 1
      %p87 = por %p85, %p86
      %p89 = scmp.ne.s32.totalorder %s74, %s88
      %p90 = scmp.eq.s32.totalorder %s22, 0
      %p91 = por %p89, %p90
      %s93 = sadd.s32 %s92, 1
      %p96 = scmp.eq.s32.totalorder %s16, 1
      %p97 = scmp.ne.s32.totalorder %s92, %s94
      %p98 = scmp.eq.s32.totalorder %s16, 0
      %p99 = por %p97, %p98
      %p100 = scmp.ne.s32.totalorder %s92, %s94
      %p101 = scmp.eq.s32.totalorder %s21, 1
      %p102 = por %p100, %p101
      %p103 = scmp.ne.s32.totalorder %s94, %s95
      %p104 = scmp.eq.s32.totalorder %s21, 0
      %p105 = por %p103, %p104
      %p106 = scmp.ne.s32.totalorder %s94, %s95
      %p107 = scmp.eq.s32.totalorder %s22, 1
      %p108 = por %p106, %p107
      %p110 = scmp.ne.s32.totalorder %s95, %s109
      %p111 = scmp.eq.s32.totalorder %s22, 0
      %p112 = por %p110, %p111
      %s114 = sadd.s32 %s113, 1
      %p117 = scmp.eq.s32.totalorder %s16, 1
      %p118 = scmp.ne.s32.totalorder %s113, %s115
      %p119 = scmp.eq.s32.totalorder %s16, 0
      %p120 = por %p118, %p119
      %p121 = scmp.ne.s32.totalorder %s113, %s115
      %p122 = scmp.eq.s32.totalorder %s21, 1
      %p123 = por %p121, %p122
      %p124 = scmp.ne.s32.totalorder %s115, %s116
      %p125 = scmp.eq.s32.totalorder %s21, 0
      %p126 = por %p124, %p125
      %p127 = scmp.ne.s32.totalorder %s115, %s116
      %p128 = scmp.eq.s32.totalorder %s22, 1
      %p129 = por %p127, %p128
      %p131 = scmp.ne.s32.totalorder %s116, %s130
      %p132 = scmp.eq.s32.totalorder %s22, 0
      %p133 = por %p131, %p132
      %s135 = sadd.s32 %s134, 1
      %p138 = scmp.eq.s32.totalorder %s16, 1
      %p139 = scmp.ne.s32.totalorder %s134, %s136
      %p140 = scmp.eq.s32.totalorder %s16, 0
      %p141 = por %p139, %p140
      %p142 = scmp.ne.s32.totalorder %s134, %s136
      %p143 = scmp.eq.s32.totalorder %s21, 1
      %p144 = por %p142, %p143
      %p145 = scmp.ne.s32.totalorder %s136, %s137
      %p146 = scmp.eq.s32.totalorder %s21, 0
      %p147 = por %p145, %p146
      %p148 = scmp.ne.s32.totalorder %s136, %s137
      %p149 = scmp.eq.s32.totalorder %s22, 1
      %p150 = por %p148, %p149
      %p152 = scmp.ne.s32.totalorder %s137, %s151
      %p153 = scmp.eq.s32.totalorder %s22, 0
      %p154 = por %p152, %p153
      %s156 = sadd.s32 %s155, 1
      %p159 = scmp.eq.s32.totalorder %s16, 1
      %p160 = scmp.ne.s32.totalorder %s155, %s157
      %p161 = scmp.eq.s32.totalorder %s16, 0
      %p162 = por %p160, %p161
      %p163 = scmp.ne.s32.totalorder %s155, %s157
      %p164 = scmp.eq.s32.totalorder %s21, 1
      %p165 = por %p163, %p164
      %p166 = scmp.ne.s32.totalorder %s157, %s158
      %p167 = scmp.eq.s32.totalorder %s21, 0
      %p168 = por %p166, %p167
      %p169 = scmp.ne.s32.totalorder %s157, %s158
      %p170 = scmp.eq.s32.totalorder %s22, 1
      %p171 = por %p169, %p170
      %p173 = scmp.ne.s32.totalorder %s158, %s172
      %p174 = scmp.eq.s32.totalorder %s22, 0
      %p175 = por %p173, %p174
      %s176 = ssub.s32 %s16, %s23
      %p177 = scmp.eq.s32.totalorder %s176, 0
      %s179 = sadd.s32 %s178, 1
      %s180 = scalar_select %p177, %s178, %s179
      %p183 = pneg %p177
      %p184 = scmp.eq.s32.totalorder %s16, 1
      %p185 = por %p183, %p184
      %p186 = scmp.ne.s32.totalorder %s178, %s181
      %p187 = scmp.eq.s32.totalorder %s16, 0
      %p188 = por %p186, %p187
      %p189 = scmp.ne.s32.totalorder %s178, %s181
      %p190 = scmp.eq.s32.totalorder %s21, 1
      %p191 = por %p189, %p190
      %p192 = scmp.ne.s32.totalorder %s181, %s182
      %p193 = scmp.eq.s32.totalorder %s21, 0
      %p194 = por %p192, %p193
      %p195 = scmp.ne.s32.totalorder %s181, %s182
      %p196 = scmp.eq.s32.totalorder %s22, 1
      %p197 = por %p195, %p196
      %p199 = scmp.ne.s32.totalorder %s182, %s198
      %p200 = scmp.eq.s32.totalorder %s22, 0
      %p201 = por %p199, %p200
      %p202 = scmp.le.s32.totalorder 1, %s16
      %p203 = scmp.lt.s32.totalorder %s16, 3
      %p204 = pnand %p202, %p203
      %p205 = pneg %p204
      // Predicated region
      $region9: #{encoder_forward.1} parent=5 // pred_check
        _
      $region10: #{encoder_forward.1} parent=5 // pred_check_branch
        %207 = sbr.rel (%p204) target = $region12
      $region11: #{encoder_forward.1} parent=5 // pred_region
        %s208 = ssub.s32 %s16, 1
        // Predicated region
        $region13: #{encoder_forward.1} parent=11 // pred_check
          %p209 = pneg %p63
        $region14: #{encoder_forward.1} parent=11 // pred_check_branch
          %211 = sbr.rel (%p209) target = $region16
        $region15: #{encoder_forward.1} parent=11 // pred_region
          _
        $region16: #{encoder_forward.1} parent=11 // pred_fallthru
          _
        // Predicated region
        $region17: #{encoder_forward.1} parent=11 // pred_check
          %p212 = pneg %p84
        $region18: #{encoder_forward.1} parent=11 // pred_check_branch
          %214 = sbr.rel (%p212) target = $region20
        $region19: #{encoder_forward.1} parent=11 // pred_region
          _
        $region20: #{encoder_forward.1} parent=11 // pred_fallthru
          _
        // Predicated region
        $region21: #{encoder_forward.1} parent=11 // pred_check
          %p215 = pneg %p105
        $region22: #{encoder_forward.1} parent=11 // pred_check_branch
          %217 = sbr.rel (%p215) target = $region24
        $region23: #{encoder_forward.1} parent=11 // pred_region
          _
        $region24: #{encoder_forward.1} parent=11 // pred_fallthru
          _
        // Predicated region
        $region25: #{encoder_forward.1} parent=11 // pred_check
          %p218 = pneg %p126
        $region26: #{encoder_forward.1} parent=11 // pred_check_branch
          %220 = sbr.rel (%p218) target = $region28
        $region27: #{encoder_forward.1} parent=11 // pred_region
          _
        $region28: #{encoder_forward.1} parent=11 // pred_fallthru
          _
        // Predicated region
        $region29: #{encoder_forward.1} parent=11 // pred_check
          %p221 = pneg %p147
        $region30: #{encoder_forward.1} parent=11 // pred_check_branch
          %223 = sbr.rel (%p221) target = $region32
        $region31: #{encoder_forward.1} parent=11 // pred_region
          _
        $region32: #{encoder_forward.1} parent=11 // pred_fallthru
          _
        // Predicated region
        $region33: #{encoder_forward.1} parent=11 // pred_check
          %p224 = pneg %p168
        $region34: #{encoder_forward.1} parent=11 // pred_check_branch
          %226 = sbr.rel (%p224) target = $region36
        $region35: #{encoder_forward.1} parent=11 // pred_region
          _
        $region36: #{encoder_forward.1} parent=11 // pred_fallthru
          _
      $region12: #{encoder_forward.1} parent=5 // pred_fallthru
        _
      %p227 = scmp.lt.s32.totalorder %s16, 2
      // Predicated region
      $region37: #{encoder_forward.1} parent=5 // pred_check
        %p228 = pneg %p227
      $region38: #{encoder_forward.1} parent=5 // pred_check_branch
        %230 = sbr.rel (%p228) target = $region40
      $region39: #{encoder_forward.1} parent=5 // pred_region
        // Predicated region
        $region41: #{encoder_forward.1} parent=39 // pred_check
          %p231 = pneg %p36
        $region42: #{encoder_forward.1} parent=39 // pred_check_branch
          %233 = sbr.rel (%p231) target = $region44
        $region43: #{encoder_forward.1} parent=39 // pred_region
          %s234 = smul.u32 32, %s16
          %s235 = ssub.s32 63, %s234
          %p236 = scmp.lt.s32.totalorder %s235, 32
          %s237 = scalar_select %p236, %s235, 32
          %s238 = smul.u32 128, %s237
          %p239 = scmp.lt.s32.totalorder %s234, 62
          %s240 = scalar_select %p239, %s234, 62
          %s241 = smul.addr %s240, 8
          %s242 = scalar_lea.vmem %s0, %s241
          %s243 = smul.u32 32, %s16
          %s244 = ssub.s32 63, %s243
          %p245 = scmp.lt.s32.totalorder %s244, 32
          %s246 = scalar_select %p245, %s244, 32
          %s247 = smul.u32 128, %s246
        $region44: #{encoder_forward.1} parent=39 // pred_fallthru
          _
      $region40: #{encoder_forward.1} parent=5 // pred_fallthru
        _
      %p248 = scmp.le.s32.totalorder 1, %s16
      %p249 = scmp.lt.s32.totalorder %s16, 3
      %p250 = pnand %p248, %p249
      %p251 = pneg %p250
      // Predicated region
      $region45: #{encoder_forward.1} parent=5 // pred_check
        _
      $region46: #{encoder_forward.1} parent=5 // pred_check_branch
        %253 = sbr.rel (%p250) target = $region48
      $region47: #{encoder_forward.1} parent=5 // pred_region
        %s254 = ssub.s32 %s16, 1
        %s255 = smul.u32 32, %s21
        %s256 = ssub.s32 63, %s255
        %p257 = scmp.lt.s32.totalorder %s256, 32
        %s258 = scalar_select %p257, %s256, 32
        %s259 = smul.u32 128, %s258
        %p260 = scmp.lt.s32.totalorder %s255, 62
        %s261 = scalar_select %p260, %s255, 62
        %s262 = smul.addr %s261, 8
        %s263 = scalar_lea.vmem %s0, %s262
        %p264 = pneg %p42
        %p265 = pneg %p39
        %p266 = pneg %p63
        %p267 = pneg %p60
        %p268 = pneg %p84
        %p269 = pneg %p81
        %p270 = pneg %p105
        %p271 = pneg %p102
        %p272 = pneg %p126
        %p273 = pneg %p123
        %p274 = pneg %p147
        %p275 = pneg %p144
        %p276 = pneg %p168
        %p277 = pneg %p165
        %p278 = pneg %p194
        %p279 = pneg %p191
        %s280 = sand.u32 %s181, 1
        %s281 = scalar_lea.sflag [#allocation3], %s280
        %s282 = sand.u32 %s181, 1
        %s283 = smul.addr %s282, 4
        %s284 = scalar_lea.vmem [#allocation2], %s283
        %s285 = smul.u32 32, %s21
        %s286 = ssub.s32 63, %s285
        %p287 = scmp.lt.s32.totalorder %s286, 32
        %s288 = scalar_select %p287, %s286, 32
        %s289 = smul.u32 128, %s288
        %p290 = scmp.lt.s32.totalorder %s285, 62
        %s291 = scalar_select %p290, %s285, 62
        %s292 = smul.addr %s291, 8
        %s293 = scalar_lea.vmem %s0, %s292
        %s294 = smul.u32 32, %s21
        %s295 = ssub.s32 63, %s294
        %p296 = scmp.lt.s32.totalorder %s295, 32
        %s297 = scalar_select %p296, %s295, 32
        %s298 = smul.u32 128, %s297
        %s299 = smul.u32 2, %s21
        %v301 = vld [vmem:[%s293] sm:$0xff]
        %v302 = vld [vmem:[%s293 + $0x8] sm:$0xff]
        %v303 = vld [vmem:[%s293 + $0x10] sm:$0xff]
        %v304 = vld [vmem:[%s293 + $0x18] sm:$0xff]
        %v305 = vld [vmem:[%s293 + $0x20] sm:$0xff]
        %v306 = vld [vmem:[%s293 + $0x28] sm:$0xff]
        %v307 = vld [vmem:[%s293 + $0x30] sm:$0xff]
        %v308 = vld [vmem:[%s293 + $0x38] sm:$0xff]
        %v309 = vld [vmem:[%s293 + $0x40] sm:$0xff]
        %v310 = vld [vmem:[%s293 + $0x48] sm:$0xff]
        %v311 = vld [vmem:[%s293 + $0x50] sm:$0xff]
        %v312 = vld [vmem:[%s293 + $0x58] sm:$0xff]
        %v313 = vld [vmem:[%s293 + $0x60] sm:$0xff]
        %v314 = vld [vmem:[%s293 + $0x68] sm:$0xff]
        %v315 = vld [vmem:[%s293 + $0x70] sm:$0xff]
        %v316 = vld [vmem:[%s293 + $0x78] sm:$0xff]
        %v317 = vld [vmem:[%s293 + $0x80] sm:$0xff]
        %v318 = vld [vmem:[%s293 + $0x88] sm:$0xff]
        %v319 = vld [vmem:[%s293 + $0x90] sm:$0xff]
        %v320 = vld [vmem:[%s293 + $0x98] sm:$0xff]
        %v321 = vld [vmem:[%s293 + $0xa0] sm:$0xff]
        %v322 = vld [vmem:[%s293 + $0xa8] sm:$0xff]
        %v323 = vld [vmem:[%s293 + $0xb0] sm:$0xff]
        %v324 = vld [vmem:[%s293 + $0xb8] sm:$0xff]
        %v325 = vld [vmem:[%s293 + $0xc0] sm:$0xff]
        %v326 = vld [vmem:[%s293 + $0xc8] sm:$0xff]
        %v327 = vld [vmem:[%s293 + $0xd0] sm:$0xff]
        %v328 = vld [vmem:[%s293 + $0xd8] sm:$0xff]
        %v329 = vld [vmem:[%s293 + $0xe0] sm:$0xff]
        %v330 = vld [vmem:[%s293 + $0xe8] sm:$0xff]
        %v331 = vld [vmem:[%s293 + $0xf0] sm:$0xff]
        %v332 = vld [vmem:[%s293 + $0xf8] sm:$0xff]
        %v333 = vpack.c.bf16 %v302, %v301
        %v334 = vpack.c.bf16 %v304, %v303
        %v335 = vpack.c.bf16 %v306, %v305
        %v336 = vpack.c.bf16 %v308, %v307
        %v337 = vpack.c.bf16 %v310, %v309
        %v338 = vpack.c.bf16 %v312, %v311
        %v339 = vpack.c.bf16 %v314, %v313
        %v340 = vpack.c.bf16 %v316, %v315
        %v341 = vpack.c.bf16 %v318, %v317
        %v342 = vpack.c.bf16 %v320, %v319
        %v343 = vpack.c.bf16 %v322, %v321
        %v344 = vpack.c.bf16 %v324, %v323
        %v345 = vpack.c.bf16 %v326, %v325
        %v346 = vpack.c.bf16 %v328, %v327
        %v347 = vpack.c.bf16 %v330, %v329
        %v348 = vpack.c.bf16 %v332, %v331
        %v349 = vld [vmem:[%s1] sm:$0xff]
        %v350 = vld [vmem:[%s1 + $0x8] sm:$0xff]
        %v351 = vld [vmem:[%s1 + $0x10] sm:$0xff]
        %v352 = vld [vmem:[%s1 + $0x18] sm:$0xff]
        %v353 = vld [vmem:[%s5] sm:$0x3]
        %v355 = vlaneseq
        %v356 = vshrl.u32 %v355, 7
        %v357 = vsub.s32 0, %v356
        %v358 = vrot.slane %v353, %v357
        %v359 = vlaneseq
        %v360 = vshrl.u32 %v359, 7
        %v361 = vsub.s32 1, %v360
        %v362 = vrot.slane %v353, %v361
        %v369 = vunpack.c.l.b16 %v349
        %v370 = vunpack.c.h.b16 %v349
        %v371 = vunpack.c.l.b16 %v350
        %v372 = vunpack.c.h.b16 %v350
        %v373 = vunpack.c.l.b16 %v351
        %v374 = vunpack.c.h.b16 %v351
        %v375 = vunpack.c.l.b16 %v352
        %v376 = vunpack.c.h.b16 %v352
        %v377 = vpack.c.b16 %v371, %v369
        %v378 = vpack.c.b16 %v372, %v370
        %v379 = vpack.c.b16 %v375, %v373
        %v380 = vpack.c.b16 %v376, %v374
        %vm385 = vcmask 261120
        %v387 = vsel %vm385, %v333, 0
        %v390 = vsel %vm385, %v334, 0
        %v393 = vsel %vm385, %v335, 0
        %v396 = vsel %vm385, %v336, 0
        %v399 = vsel %vm385, %v337, 0
        %v402 = vsel %vm385, %v338, 0
        %v405 = vsel %vm385, %v339, 0
        %v408 = vsel %vm385, %v340, 0
        %v411 = vsel %vm385, %v341, 0
        %v414 = vsel %vm385, %v342, 0
        %v417 = vsel %vm385, %v343, 0
        %v420 = vsel %vm385, %v344, 0
        %v423 = vsel %vm385, %v345, 0
        %v426 = vsel %vm385, %v346, 0
        %v429 = vsel %vm385, %v347, 0
        %v432 = vsel %vm385, %v348, 0
        %434 = vmatprep.subr.bf16.mxu0 %v378
        %435 = vmatpush1.bf16.msra.mxu0 %v377
        %436 = vmatprep.subr.bf16.mxu0 %v380
        %437 = vmatpush1.bf16.msra.mxu0 %v379
        %438 = vmatprep.subr.bf16.mxu0 0
        %439 = vmatpush1.bf16.msra.mxu0 0
        %440 = vmatprep.subr.bf16.mxu0 0
        %441 = vmatpush1.bf16.msra.mxu0 0
        %442 = vmatprep.subr.bf16.mxu0 0
        %443 = vmatpush1.bf16.msra.mxu0 0
        %444 = vmatprep.subr.bf16.mxu0 0
        %445 = vmatpush1.bf16.msra.mxu0 0
        %446 = vmatprep.subr.bf16.mxu0 0
        %447 = vmatpush1.bf16.msra.mxu0 0
        %448 = vmatprep.subr.bf16.mxu0 0
        %449 = vmatpush1.bf16.msra.mxu0 0
        %450 = vmatprep.subr.bf16.mxu0 0
        %451 = vmatpush1.bf16.msra.mxu0 0
        %452 = vmatprep.subr.bf16.mxu0 0
        %453 = vmatpush1.bf16.msra.mxu0 0
        %454 = vmatprep.subr.bf16.mxu0 0
        %455 = vmatpush1.bf16.msra.mxu0 0
        %456 = vmatprep.subr.bf16.mxu0 0
        %457 = vmatpush1.bf16.msra.mxu0 0
        %458 = vmatprep.subr.bf16.mxu0 0
        %459 = vmatpush1.bf16.msra.mxu0 0
        %460 = vmatprep.subr.bf16.mxu0 0
        %461 = vmatpush1.bf16.msra.mxu0 0
        %462 = vmatprep.subr.bf16.mxu0 0
        %463 = vmatpush1.bf16.msra.mxu0 0
        %464 = vmatprep.subr.bf16.mxu0 0
        %465 = vmatpush1.bf16.msra.mxu0 0
        %466 = vmatprep.mubr.bf16.mxu0 0
        %467 = vmatmul.mubr.bf16.gmra.mrb[0].mxu0 %v387
        %v468 = vpop.f32.mrb[0].mxu0
        %v469 = vadd.f32 %v358, %v468
        %v470 = vpop.f32.mrb[0].mxu0
        %v471 = vadd.f32 %v362, %v470
        %v472 = vpop.f32.mrb[0].mxu0
        %v473 = vadd.f32 %v358, %v472
        %v474 = vpop.f32.mrb[0].mxu0
        %v475 = vadd.f32 %v362, %v474
        %476 = vmatprep.mubr.bf16.mxu0 0
        %477 = vmatmul.mubr.bf16.gmra.mrb[0].mxu0 %v390
        %v478 = vpop.f32.mrb[0].mxu0
        %v479 = vadd.f32 %v358, %v478
        %v480 = vpop.f32.mrb[0].mxu0
        %v481 = vadd.f32 %v362, %v480
        %v482 = vpop.f32.mrb[0].mxu0
        %v483 = vadd.f32 %v358, %v482
        %v484 = vpop.f32.mrb[0].mxu0
        %v485 = vadd.f32 %v362, %v484
        %486 = vmatprep.mubr.bf16.mxu0 0
        %487 = vmatmul.mubr.bf16.gmra.mrb[0].mxu0 %v393
        %v488 = vpop.f32.mrb[0].mxu0
        %v489 = vadd.f32 %v358, %v488
        %v490 = vpop.f32.mrb[0].mxu0
        %v491 = vadd.f32 %v362, %v490
        %v492 = vpop.f32.mrb[0].mxu0
        %v493 = vadd.f32 %v358, %v492
        %v494 = vpop.f32.mrb[0].mxu0
        %v495 = vadd.f32 %v362, %v494
        %496 = vmatprep.mubr.bf16.mxu0 0
        %497 = vmatmul.mubr.bf16.gmra.mrb[0].mxu0 %v396
        %v498 = vpop.f32.mrb[0].mxu0
        %v499 = vadd.f32 %v358, %v498
        %v500 = vpop.f32.mrb[0].mxu0
        %v501 = vadd.f32 %v362, %v500
        %v502 = vpop.f32.mrb[0].mxu0
        %v503 = vadd.f32 %v358, %v502
        %v504 = vpop.f32.mrb[0].mxu0
        %v505 = vadd.f32 %v362, %v504
        %506 = vmatprep.mubr.bf16.mxu0 0
        %507 = vmatmul.mubr.bf16.gmra.mrb[0].mxu0 %v399
        %v508 = vpop.f32.mrb[0].mxu0
        %v509 = vadd.f32 %v358, %v508
        %v510 = vpop.f32.mrb[0].mxu0
        %v511 = vadd.f32 %v362, %v510
        %v512 = vpop.f32.mrb[0].mxu0
        %v513 = vadd.f32 %v358, %v512
        %v514 = vpop.f32.mrb[0].mxu0
        %v515 = vadd.f32 %v362, %v514
        %516 = vmatprep.mubr.bf16.mxu0 0
        %517 = vmatmul.mubr.bf16.gmra.mrb[0].mxu0 %v402
        %v518 = vpop.f32.mrb[0].mxu0
        %v519 = vadd.f32 %v358, %v518
        %v520 = vpop.f32.mrb[0].mxu0
        %v521 = vadd.f32 %v362, %v520
        %v522 = vpop.f32.mrb[0].mxu0
        %v523 = vadd.f32 %v358, %v522
        %v524 = vpop.f32.mrb[0].mxu0
        %v525 = vadd.f32 %v362, %v524
        %526 = vmatprep.mubr.bf16.mxu0 0
        %527 = vmatmul.mubr.bf16.gmra.mrb[0].mxu0 %v405
        %v528 = vpop.f32.mrb[0].mxu0
        %v529 = vadd.f32 %v358, %v528
        %v530 = vpop.f32.mrb[0].mxu0
        %v531 = vadd.f32 %v362, %v530
        %v532 = vpop.f32.mrb[0].mxu0
        %v533 = vadd.f32 %v358, %v532
        %v534 = vpop.f32.mrb[0].mxu0
        %v535 = vadd.f32 %v362, %v534
        %536 = vmatprep.mubr.bf16.mxu0 0
        %537 = vmatmul.mubr.bf16.gmra.mrb[0].mxu0 %v408
        %v538 = vpop.f32.mrb[0].mxu0
        %v539 = vadd.f32 %v358, %v538
        %v540 = vpop.f32.mrb[0].mxu0
        %v541 = vadd.f32 %v362, %v540
        %v542 = vpop.f32.mrb[0].mxu0
        %v543 = vadd.f32 %v358, %v542
        %v544 = vpop.f32.mrb[0].mxu0
        %v545 = vadd.f32 %v362, %v544
        %546 = vmatprep.mubr.bf16.mxu0 0
        %547 = vmatmul.mubr.bf16.gmra.mrb[0].mxu0 %v411
        %v548 = vpop.f32.mrb[0].mxu0
        %v549 = vadd.f32 %v358, %v548
        %v550 = vpop.f32.mrb[0].mxu0
        %v551 = vadd.f32 %v362, %v550
        %v552 = vpop.f32.mrb[0].mxu0
        %v553 = vadd.f32 %v358, %v552
        %v554 = vpop.f32.mrb[0].mxu0
        %v555 = vadd.f32 %v362, %v554
        %556 = vmatprep.mubr.bf16.mxu0 0
        %557 = vmatmul.mubr.bf16.gmra.mrb[0].mxu0 %v414
        %v558 = vpop.f32.mrb[0].mxu0
        %v559 = vadd.f32 %v358, %v558
        %v560 = vpop.f32.mrb[0].mxu0
        %v561 = vadd.f32 %v362, %v560
        %v562 = vpop.f32.mrb[0].mxu0
        %v563 = vadd.f32 %v358, %v562
        %v564 = vpop.f32.mrb[0].mxu0
        %v565 = vadd.f32 %v362, %v564
        %566 = vmatprep.mubr.bf16.mxu0 0
        %567 = vmatmul.mubr.bf16.gmra.mrb[0].mxu0 %v417
        %v568 = vpop.f32.mrb[0].mxu0
        %v569 = vadd.f32 %v358, %v568
        %v570 = vpop.f32.mrb[0].mxu0
        %v571 = vadd.f32 %v362, %v570
        %v572 = vpop.f32.mrb[0].mxu0
        %v573 = vadd.f32 %v358, %v572
        %v574 = vpop.f32.mrb[0].mxu0
        %v575 = vadd.f32 %v362, %v574
        %576 = vmatprep.mubr.bf16.mxu0 0
        %577 = vmatmul.mubr.bf16.gmra.mrb[0].mxu0 %v420
        %v578 = vpop.f32.mrb[0].mxu0
        %v579 = vadd.f32 %v358, %v578
        %v580 = vpop.f32.mrb[0].mxu0
        %v581 = vadd.f32 %v362, %v580
        %v582 = vpop.f32.mrb[0].mxu0
        %v583 = vadd.f32 %v358, %v582
        %v584 = vpop.f32.mrb[0].mxu0
        %v585 = vadd.f32 %v362, %v584
        %586 = vmatprep.mubr.bf16.mxu0 0
        %587 = vmatmul.mubr.bf16.gmra.mrb[0].mxu0 %v423
        %v588 = vpop.f32.mrb[0].mxu0
        %v589 = vadd.f32 %v358, %v588
        %v590 = vpop.f32.mrb[0].mxu0
        %v591 = vadd.f32 %v362, %v590
        %v592 = vpop.f32.mrb[0].mxu0
        %v593 = vadd.f32 %v358, %v592
        %v594 = vpop.f32.mrb[0].mxu0
        %v595 = vadd.f32 %v362, %v594
        %596 = vmatprep.mubr.bf16.mxu0 0
        %597 = vmatmul.mubr.bf16.gmra.mrb[0].mxu0 %v426
        %v598 = vpop.f32.mrb[0].mxu0
        %v599 = vadd.f32 %v358, %v598
        %v600 = vpop.f32.mrb[0].mxu0
        %v601 = vadd.f32 %v362, %v600
        %v602 = vpop.f32.mrb[0].mxu0
        %v603 = vadd.f32 %v358, %v602
        %v604 = vpop.f32.mrb[0].mxu0
        %v605 = vadd.f32 %v362, %v604
        %606 = vmatprep.mubr.bf16.mxu0 0
        %607 = vmatmul.mubr.bf16.gmra.mrb[0].mxu0 %v429
        %v608 = vpop.f32.mrb[0].mxu0
        %v609 = vadd.f32 %v358, %v608
        %v610 = vpop.f32.mrb[0].mxu0
        %v611 = vadd.f32 %v362, %v610
        %v612 = vpop.f32.mrb[0].mxu0
        %v613 = vadd.f32 %v358, %v612
        %v614 = vpop.f32.mrb[0].mxu0
        %v615 = vadd.f32 %v362, %v614
        %616 = vmatprep.mubr.bf16.mxu0 0
        %617 = vmatmul.mubr.bf16.gmra.mrb[0].mxu0 %v432
        %v618 = vpop.f32.mrb[0].mxu0
        %v619 = vadd.f32 %v358, %v618
        %v620 = vpop.f32.mrb[0].mxu0
        %v621 = vadd.f32 %v362, %v620
        %v622 = vpop.f32.mrb[0].mxu0
        %v623 = vadd.f32 %v358, %v622
        %v624 = vpop.f32.mrb[0].mxu0
        %v625 = vadd.f32 %v362, %v624
        %626 = vdwg.mxu0
        %v627 = vmax.f32 %v469, 0.0
        %v628 = vmax.f32 %v471, 0.0
        %v629 = vmax.f32 %v473, 0.0
        %v630 = vmax.f32 %v475, 0.0
        %v631 = vmax.f32 %v479, 0.0
        %v632 = vmax.f32 %v481, 0.0
        %v633 = vmax.f32 %v483, 0.0
        %v634 = vmax.f32 %v485, 0.0
        %v635 = vmax.f32 %v489, 0.0
        %v636 = vmax.f32 %v491, 0.0
        %v637 = vmax.f32 %v493, 0.0
        %v638 = vmax.f32 %v495, 0.0
        %v639 = vmax.f32 %v499, 0.0
        %v640 = vmax.f32 %v501, 0.0
        %v641 = vmax.f32 %v503, 0.0
        %v642 = vmax.f32 %v505, 0.0
        %v643 = vmax.f32 %v509, 0.0
        %v644 = vmax.f32 %v511, 0.0
        %v645 = vmax.f32 %v513, 0.0
        %v646 = vmax.f32 %v515, 0.0
        %v647 = vmax.f32 %v519, 0.0
        %v648 = vmax.f32 %v521, 0.0
        %v649 = vmax.f32 %v523, 0.0
        %v650 = vmax.f32 %v525, 0.0
        %v651 = vmax.f32 %v529, 0.0
        %v652 = vmax.f32 %v531, 0.0
        %v653 = vmax.f32 %v533, 0.0
        %v654 = vmax.f32 %v535, 0.0
        %v655 = vmax.f32 %v539, 0.0
        %v656 = vmax.f32 %v541, 0.0
        %v657 = vmax.f32 %v543, 0.0
        %v658 = vmax.f32 %v545, 0.0
        %v659 = vmax.f32 %v549, 0.0
        %v660 = vmax.f32 %v551, 0.0
        %v661 = vmax.f32 %v553, 0.0
        %v662 = vmax.f32 %v555, 0.0
        %v663 = vmax.f32 %v559, 0.0
        %v664 = vmax.f32 %v561, 0.0
        %v665 = vmax.f32 %v563, 0.0
        %v666 = vmax.f32 %v565, 0.0
        %v667 = vmax.f32 %v569, 0.0
        %v668 = vmax.f32 %v571, 0.0
        %v669 = vmax.f32 %v573, 0.0
        %v670 = vmax.f32 %v575, 0.0
        %v671 = vmax.f32 %v579, 0.0
        %v672 = vmax.f32 %v581, 0.0
        %v673 = vmax.f32 %v583, 0.0
        %v674 = vmax.f32 %v585, 0.0
        %v675 = vmax.f32 %v589, 0.0
        %v676 = vmax.f32 %v591, 0.0
        %v677 = vmax.f32 %v593, 0.0
        %v678 = vmax.f32 %v595, 0.0
        %v679 = vmax.f32 %v599, 0.0
        %v680 = vmax.f32 %v601, 0.0
        %v681 = vmax.f32 %v603, 0.0
        %v682 = vmax.f32 %v605, 0.0
        %v683 = vmax.f32 %v609, 0.0
        %v684 = vmax.f32 %v611, 0.0
        %v685 = vmax.f32 %v613, 0.0
        %v686 = vmax.f32 %v615, 0.0
        %v687 = vmax.f32 %v619, 0.0
        %v688 = vmax.f32 %v621, 0.0
        %v689 = vmax.f32 %v623, 0.0
        %v690 = vmax.f32 %v625, 0.0
        %v691 = vpack.c.bf16 %v629, %v627
        %v692 = vpack.c.bf16 %v630, %v628
        %v693 = vpack.c.bf16 %v633, %v631
        %v694 = vpack.c.bf16 %v634, %v632
        %v695 = vpack.c.bf16 %v637, %v635
        %v696 = vpack.c.bf16 %v638, %v636
        %v697 = vpack.c.bf16 %v641, %v639
        %v698 = vpack.c.bf16 %v642, %v640
        %v699 = vpack.c.bf16 %v645, %v643
        %v700 = vpack.c.bf16 %v646, %v644
        %v701 = vpack.c.bf16 %v649, %v647
        %v702 = vpack.c.bf16 %v650, %v648
        %v703 = vpack.c.bf16 %v653, %v651
        %v704 = vpack.c.bf16 %v654, %v652
        %v705 = vpack.c.bf16 %v657, %v655
        %v706 = vpack.c.bf16 %v658, %v656
        %v707 = vpack.c.bf16 %v661, %v659
        %v708 = vpack.c.bf16 %v662, %v660
        %v709 = vpack.c.bf16 %v665, %v663
        %v710 = vpack.c.bf16 %v666, %v664
        %v711 = vpack.c.bf16 %v669, %v667
        %v712 = vpack.c.bf16 %v670, %v668
        %v713 = vpack.c.bf16 %v673, %v671
        %v714 = vpack.c.bf16 %v674, %v672
        %v715 = vpack.c.bf16 %v677, %v675
        %v716 = vpack.c.bf16 %v678, %v676
        %v717 = vpack.c.bf16 %v681, %v679
        %v718 = vpack.c.bf16 %v682, %v680
        %v719 = vpack.c.bf16 %v685, %v683
        %v720 = vpack.c.bf16 %v686, %v684
        %v721 = vpack.c.bf16 %v689, %v687
        %v722 = vpack.c.bf16 %v690, %v688
        %v723 = vld [vmem:[%s2] sm:$0xf]
        %v724 = vld [vmem:[%s2 + $0x4] sm:$0xf]
        %v725 = vld [vmem:[%s2 + $0x8] sm:$0xf]
        %v726 = vld [vmem:[%s2 + $0xc] sm:$0xf]
        %v727 = vld [vmem:[%s2 + $0x10] sm:$0xf]
        %v728 = vld [vmem:[%s2 + $0x14] sm:$0xf]
        %v729 = vld [vmem:[%s2 + $0x18] sm:$0xf]
        %v730 = vld [vmem:[%s2 + $0x1c] sm:$0xf]
        %v731 = vld [vmem:[%s2 + $0x20] sm:$0xf]
        %v732 = vld [vmem:[%s2 + $0x24] sm:$0xf]
        %v733 = vld [vmem:[%s2 + $0x28] sm:$0xf]
        %v734 = vld [vmem:[%s2 + $0x2c] sm:$0xf]
        %v735 = vld [vmem:[%s2 + $0x30] sm:$0xf]
        %v736 = vld [vmem:[%s2 + $0x34] sm:$0xf]
        %v737 = vld [vmem:[%s2 + $0x38] sm:$0xf]
        %v738 = vld [vmem:[%s2 + $0x3c] sm:$0xf]
        %v739 = vld [vmem:[%s2 + $0x40] sm:$0xf]
        %v740 = vld [vmem:[%s2 + $0x44] sm:$0xf]
        %v741 = vld [vmem:[%s2 + $0x48] sm:$0xf]
        %v742 = vld [vmem:[%s2 + $0x4c] sm:$0xf]
        %v743 = vld [vmem:[%s2 + $0x50] sm:$0xf]
        %v744 = vld [vmem:[%s2 + $0x54] sm:$0xf]
        %v745 = vld [vmem:[%s2 + $0x58] sm:$0xf]
        %v746 = vld [vmem:[%s2 + $0x5c] sm:$0xf]
        %v747 = vld [vmem:[%s2 + $0x60] sm:$0xf]
        %v748 = vld [vmem:[%s2 + $0x64] sm:$0xf]
        %v749 = vld [vmem:[%s2 + $0x68] sm:$0xf]
        %v750 = vld [vmem:[%s2 + $0x6c] sm:$0xf]
        %v751 = vld [vmem:[%s2 + $0x70] sm:$0xf]
        %v752 = vld [vmem:[%s2 + $0x74] sm:$0xf]
        %v753 = vld [vmem:[%s2 + $0x78] sm:$0xf]
        %v754 = vld [vmem:[%s2 + $0x7c] sm:$0xf]
        %v755 = vld [vmem:[%s5 + $0x2] sm:$0x1]
        %v757 = vlaneseq
        %v758 = vshrl.u32 %v757, 7
        %v759 = vsub.s32 0, %v758
        %v760 = vrot.slane %v755, %v759
        %v794 = vunpack.c.l.b16 %v723
        %v795 = vunpack.c.l.b16 %v724
        %v796 = vunpack.c.l.b16 %v725
        %v797 = vunpack.c.l.b16 %v726
        %v798 = vunpack.c.l.b16 %v727
        %v799 = vunpack.c.l.b16 %v728
        %v800 = vunpack.c.l.b16 %v729
        %v801 = vunpack.c.l.b16 %v730
        %v802 = vunpack.c.l.b16 %v731
        %v803 = vunpack.c.l.b16 %v732
        %v804 = vunpack.c.l.b16 %v733
        %v805 = vunpack.c.l.b16 %v734
        %v806 = vunpack.c.l.b16 %v735
        %v807 = vunpack.c.l.b16 %v736
        %v808 = vunpack.c.l.b16 %v737
        %v809 = vunpack.c.l.b16 %v738
        %v810 = vunpack.c.l.b16 %v739
        %v811 = vunpack.c.l.b16 %v740
        %v812 = vunpack.c.l.b16 %v741
        %v813 = vunpack.c.l.b16 %v742
        %v814 = vunpack.c.l.b16 %v743
        %v815 = vunpack.c.l.b16 %v744
        %v816 = vunpack.c.l.b16 %v745
        %v817 = vunpack.c.l.b16 %v746
        %v818 = vunpack.c.l.b16 %v747
        %v819 = vunpack.c.l.b16 %v748
        %v820 = vunpack.c.l.b16 %v749
        %v821 = vunpack.c.l.b16 %v750
        %v822 = vunpack.c.l.b16 %v751
        %v823 = vunpack.c.l.b16 %v752
        %v824 = vunpack.c.l.b16 %v753
        %v825 = vunpack.c.l.b16 %v754
        %v826 = vpack.c.b16 %v795, %v794
        %v827 = vpack.c.b16 %v797, %v796
        %v828 = vpack.c.b16 %v799, %v798
        %v829 = vpack.c.b16 %v801, %v800
        %v830 = vpack.c.b16 %v803, %v802
        %v831 = vpack.c.b16 %v805, %v804
        %v832 = vpack.c.b16 %v807, %v806
        %v833 = vpack.c.b16 %v809, %v808
        %v834 = vpack.c.b16 %v811, %v810
        %v835 = vpack.c.b16 %v813, %v812
        %v836 = vpack.c.b16 %v815, %v814
        %v837 = vpack.c.b16 %v817, %v816
        %v838 = vpack.c.b16 %v819, %v818
        %v839 = vpack.c.b16 %v821, %v820
        %v840 = vpack.c.b16 %v823, %v822
        %v841 = vpack.c.b16 %v825, %v824
        %858 = vmatprep.subr.bf16.mxu0 0
        %859 = vmatpush1.bf16.msra.mxu0 %v826
        %860 = vmatprep.subr.bf16.mxu0 0
        %861 = vmatpush1.bf16.msra.mxu0 %v827
        %862 = vmatprep.subr.bf16.mxu0 0
        %863 = vmatpush1.bf16.msra.mxu0 %v828
        %864 = vmatprep.subr.bf16.mxu0 0
        %865 = vmatpush1.bf16.msra.mxu0 %v829
        %866 = vmatprep.subr.bf16.mxu0 0
        %867 = vmatpush1.bf16.msra.mxu0 %v830
        %868 = vmatprep.subr.bf16.mxu0 0
        %869 = vmatpush1.bf16.msra.mxu0 %v831
        %870 = vmatprep.subr.bf16.mxu0 0
        %871 = vmatpush1.bf16.msra.mxu0 %v832
        %872 = vmatprep.subr.bf16.mxu0 0
        %873 = vmatpush1.bf16.msra.mxu0 %v833
        %874 = vmatprep.subr.bf16.mxu0 0
        %875 = vmatpush1.bf16.msra.mxu0 %v834
        %876 = vmatprep.subr.bf16.mxu0 0
        %877 = vmatpush1.bf16.msra.mxu0 %v835
        %878 = vmatprep.subr.bf16.mxu0 0
        %879 = vmatpush1.bf16.msra.mxu0 %v836
        %880 = vmatprep.subr.bf16.mxu0 0
        %881 = vmatpush1.bf16.msra.mxu0 %v837
        %882 = vmatprep.subr.bf16.mxu0 0
        %883 = vmatpush1.bf16.msra.mxu0 %v838
        %884 = vmatprep.subr.bf16.mxu0 0
        %885 = vmatpush1.bf16.msra.mxu0 %v839
        %886 = vmatprep.subr.bf16.mxu0 0
        %887 = vmatpush1.bf16.msra.mxu0 %v840
        %888 = vmatprep.subr.bf16.mxu0 0
        %889 = vmatpush1.bf16.msra.mxu0 %v841
        %890 = vmatprep.mubr.bf16.mxu0 %v692
        %891 = vmatmul.mubr.bf16.gmra.mrb[0].mxu0 %v691
        %v892 = vpop.f32.mrb[0].mxu0
        %v893 = vadd.f32 %v760, %v892
        %v894 = vpop.f32.mrb[0].mxu0
        %v895 = vpop.f32.mrb[0].mxu0
        %v896 = vadd.f32 %v760, %v895
        %v897 = vpop.f32.mrb[0].mxu0
        %898 = vmatprep.mubr.bf16.mxu0 %v694
        %899 = vmatmul.mubr.bf16.gmra.mrb[0].mxu0 %v693
        %v900 = vpop.f32.mrb[0].mxu0
        %v901 = vadd.f32 %v760, %v900
        %v902 = vpop.f32.mrb[0].mxu0
        %v903 = vpop.f32.mrb[0].mxu0
        %v904 = vadd.f32 %v760, %v903
        %v905 = vpop.f32.mrb[0].mxu0
        %906 = vmatprep.mubr.bf16.mxu0 %v696
        %907 = vmatmul.mubr.bf16.gmra.mrb[0].mxu0 %v695
        %v908 = vpop.f32.mrb[0].mxu0
        %v909 = vadd.f32 %v760, %v908
        %v910 = vpop.f32.mrb[0].mxu0
        %v911 = vpop.f32.mrb[0].mxu0
        %v912 = vadd.f32 %v760, %v911
        %v913 = vpop.f32.mrb[0].mxu0
        %914 = vmatprep.mubr.bf16.mxu0 %v698
        %915 = vmatmul.mubr.bf16.gmra.mrb[0].mxu0 %v697
        %v916 = vpop.f32.mrb[0].mxu0
        %v917 = vadd.f32 %v760, %v916
        %v918 = vpop.f32.mrb[0].mxu0
        %v919 = vpop.f32.mrb[0].mxu0
        %v920 = vadd.f32 %v760, %v919
        %v921 = vpop.f32.mrb[0].mxu0
        %922 = vmatprep.mubr.bf16.mxu0 %v700
        %923 = vmatmul.mubr.bf16.gmra.mrb[0].mxu0 %v699
        %v924 = vpop.f32.mrb[0].mxu0
        %v925 = vadd.f32 %v760, %v924
        %v926 = vpop.f32.mrb[0].mxu0
        %v927 = vpop.f32.mrb[0].mxu0
        %v928 = vadd.f32 %v760, %v927
        %v929 = vpop.f32.mrb[0].mxu0
        %930 = vmatprep.mubr.bf16.mxu0 %v702
        %931 = vmatmul.mubr.bf16.gmra.mrb[0].mxu0 %v701
        %v932 = vpop.f32.mrb[0].mxu0
        %v933 = vadd.f32 %v760, %v932
        %v934 = vpop.f32.mrb[0].mxu0
        %v935 = vpop.f32.mrb[0].mxu0
        %v936 = vadd.f32 %v760, %v935
        %v937 = vpop.f32.mrb[0].mxu0
        %938 = vmatprep.mubr.bf16.mxu0 %v704
        %939 = vmatmul.mubr.bf16.gmra.mrb[0].mxu0 %v703
        %v940 = vpop.f32.mrb[0].mxu0
        %v941 = vadd.f32 %v760, %v940
        %v942 = vpop.f32.mrb[0].mxu0
        %v943 = vpop.f32.mrb[0].mxu0
        %v944 = vadd.f32 %v760, %v943
        %v945 = vpop.f32.mrb[0].mxu0
        %946 = vmatprep.mubr.bf16.mxu0 %v706
        %947 = vmatmul.mubr.bf16.gmra.mrb[0].mxu0 %v705
        %v948 = vpop.f32.mrb[0].mxu0
        %v949 = vadd.f32 %v760, %v948
        %v950 = vpop.f32.mrb[0].mxu0
        %v951 = vpop.f32.mrb[0].mxu0
        %v952 = vadd.f32 %v760, %v951
        %v953 = vpop.f32.mrb[0].mxu0
        %954 = vmatprep.mubr.bf16.mxu0 %v708
        %955 = vmatmul.mubr.bf16.gmra.mrb[0].mxu0 %v707
        %v956 = vpop.f32.mrb[0].mxu0
        %v957 = vadd.f32 %v760, %v956
        %v958 = vpop.f32.mrb[0].mxu0
        %v959 = vpop.f32.mrb[0].mxu0
        %v960 = vadd.f32 %v760, %v959
        %v961 = vpop.f32.mrb[0].mxu0
        %962 = vmatprep.mubr.bf16.mxu0 %v710
        %963 = vmatmul.mubr.bf16.gmra.mrb[0].mxu0 %v709
        %v964 = vpop.f32.mrb[0].mxu0
        %v965 = vadd.f32 %v760, %v964
        %v966 = vpop.f32.mrb[0].mxu0
        %v967 = vpop.f32.mrb[0].mxu0
        %v968 = vadd.f32 %v760, %v967
        %v969 = vpop.f32.mrb[0].mxu0
        %970 = vmatprep.mubr.bf16.mxu0 %v712
        %971 = vmatmul.mubr.bf16.gmra.mrb[0].mxu0 %v711
        %v972 = vpop.f32.mrb[0].mxu0
        %v973 = vadd.f32 %v760, %v972
        %v974 = vpop.f32.mrb[0].mxu0
        %v975 = vpop.f32.mrb[0].mxu0
        %v976 = vadd.f32 %v760, %v975
        %v977 = vpop.f32.mrb[0].mxu0
        %978 = vmatprep.mubr.bf16.mxu0 %v714
        %979 = vmatmul.mubr.bf16.gmra.mrb[0].mxu0 %v713
        %v980 = vpop.f32.mrb[0].mxu0
        %v981 = vadd.f32 %v760, %v980
        %v982 = vpop.f32.mrb[0].mxu0
        %v983 = vpop.f32.mrb[0].mxu0
        %v984 = vadd.f32 %v760, %v983
        %v985 = vpop.f32.mrb[0].mxu0
        %986 = vmatprep.mubr.bf16.mxu0 %v716
        %987 = vmatmul.mubr.bf16.gmra.mrb[0].mxu0 %v715
        %v988 = vpop.f32.mrb[0].mxu0
        %v989 = vadd.f32 %v760, %v988
        %v990 = vpop.f32.mrb[0].mxu0
        %v991 = vpop.f32.mrb[0].mxu0
        %v992 = vadd.f32 %v760, %v991
        %v993 = vpop.f32.mrb[0].mxu0
        %994 = vmatprep.mubr.bf16.mxu0 %v718
        %995 = vmatmul.mubr.bf16.gmra.mrb[0].mxu0 %v717
        %v996 = vpop.f32.mrb[0].mxu0
        %v997 = vadd.f32 %v760, %v996
        %v998 = vpop.f32.mrb[0].mxu0
        %v999 = vpop.f32.mrb[0].mxu0
        %v1000 = vadd.f32 %v760, %v999
        %v1001 = vpop.f32.mrb[0].mxu0
        %1002 = vmatprep.mubr.bf16.mxu0 %v720
        %1003 = vmatmul.mubr.bf16.gmra.mrb[0].mxu0 %v719
        %v1004 = vpop.f32.mrb[0].mxu0
        %v1005 = vadd.f32 %v760, %v1004
        %v1006 = vpop.f32.mrb[0].mxu0
        %v1007 = vpop.f32.mrb[0].mxu0
        %v1008 = vadd.f32 %v760, %v1007
        %v1009 = vpop.f32.mrb[0].mxu0
        %1010 = vmatprep.mubr.bf16.mxu0 %v722
        %1011 = vmatmul.mubr.bf16.gmra.mrb[0].mxu0 %v721
        %v1012 = vpop.f32.mrb[0].mxu0
        %v1013 = vadd.f32 %v760, %v1012
        %v1014 = vpop.f32.mrb[0].mxu0
        %v1015 = vpop.f32.mrb[0].mxu0
        %v1016 = vadd.f32 %v760, %v1015
        %v1017 = vpop.f32.mrb[0].mxu0
        %1018 = vdwg.mxu0
        %v1019 = vmax.f32 %v893, 0.0
        %v1020 = vmax.f32 %v896, 0.0
        %v1021 = vmax.f32 %v901, 0.0
        %v1022 = vmax.f32 %v904, 0.0
        %v1023 = vmax.f32 %v909, 0.0
        %v1024 = vmax.f32 %v912, 0.0
        %v1025 = vmax.f32 %v917, 0.0
        %v1026 = vmax.f32 %v920, 0.0
        %v1027 = vmax.f32 %v925, 0.0
        %v1028 = vmax.f32 %v928, 0.0
        %v1029 = vmax.f32 %v933, 0.0
        %v1030 = vmax.f32 %v936, 0.0
        %v1031 = vmax.f32 %v941, 0.0
        %v1032 = vmax.f32 %v944, 0.0
        %v1033 = vmax.f32 %v949, 0.0
        %v1034 = vmax.f32 %v952, 0.0
        %v1035 = vmax.f32 %v957, 0.0
        %v1036 = vmax.f32 %v960, 0.0
        %v1037 = vmax.f32 %v965, 0.0
        %v1038 = vmax.f32 %v968, 0.0
        %v1039 = vmax.f32 %v973, 0.0
        %v1040 = vmax.f32 %v976, 0.0
        %v1041 = vmax.f32 %v981, 0.0
        %v1042 = vmax.f32 %v984, 0.0
        %v1043 = vmax.f32 %v989, 0.0
        %v1044 = vmax.f32 %v992, 0.0
        %v1045 = vmax.f32 %v997, 0.0
        %v1046 = vmax.f32 %v1000, 0.0
        %v1047 = vmax.f32 %v1005, 0.0
        %v1048 = vmax.f32 %v1008, 0.0
        %v1049 = vmax.f32 %v1013, 0.0
        %v1050 = vmax.f32 %v1016, 0.0
        %v1051 = vpack.c.bf16 %v1020, %v1019
        %v1052 = vpack.c.bf16 %v1022, %v1021
        %v1053 = vpack.c.bf16 %v1024, %v1023
        %v1054 = vpack.c.bf16 %v1026, %v1025
        %v1055 = vpack.c.bf16 %v1028, %v1027
        %v1056 = vpack.c.bf16 %v1030, %v1029
        %v1057 = vpack.c.bf16 %v1032, %v1031
        %v1058 = vpack.c.bf16 %v1034, %v1033
        %v1059 = vpack.c.bf16 %v1036, %v1035
        %v1060 = vpack.c.bf16 %v1038, %v1037
        %v1061 = vpack.c.bf16 %v1040, %v1039
        %v1062 = vpack.c.bf16 %v1042, %v1041
        %v1063 = vpack.c.bf16 %v1044, %v1043
        %v1064 = vpack.c.bf16 %v1046, %v1045
        %v1065 = vpack.c.bf16 %v1048, %v1047
        %v1066 = vpack.c.bf16 %v1050, %v1049
        %v1067 = vld [vmem:[%s3] sm:$0xf]
        %v1068 = vld [vmem:[%s3 + $0x4] sm:$0xf]
        %v1069 = vld [vmem:[%s3 + $0x8] sm:$0xf]
        %v1070 = vld [vmem:[%s3 + $0xc] sm:$0xf]
        %v1071 = vld [vmem:[%s3 + $0x10] sm:$0xf]
        %v1072 = vld [vmem:[%s3 + $0x14] sm:$0xf]
        %v1073 = vld [vmem:[%s3 + $0x18] sm:$0xf]
        %v1074 = vld [vmem:[%s3 + $0x1c] sm:$0xf]
        %v1075 = vld [vmem:[%s3 + $0x20] sm:$0xf]
        %v1076 = vld [vmem:[%s3 + $0x24] sm:$0xf]
        %v1077 = vld [vmem:[%s3 + $0x28] sm:$0xf]
        %v1078 = vld [vmem:[%s3 + $0x2c] sm:$0xf]
        %v1079 = vld [vmem:[%s3 + $0x30] sm:$0xf]
        %v1080 = vld [vmem:[%s3 + $0x34] sm:$0xf]
        %v1081 = vld [vmem:[%s3 + $0x38] sm:$0xf]
        %v1082 = vld [vmem:[%s3 + $0x3c] sm:$0xf]
        %v1083 = vld [vmem:[%s5 + $0x3] sm:$0x1]
        %v1085 = vlaneseq
        %v1086 = vshrl.u32 %v1085, 7
        %v1087 = vsub.s32 0, %v1086
        %v1088 = vrot.slane %v1083, %v1087
        %v1106 = vunpack.c.l.b16 %v1067
        %v1107 = vunpack.c.l.b16 %v1068
        %v1108 = vunpack.c.l.b16 %v1069
        %v1109 = vunpack.c.l.b16 %v1070
        %v1110 = vunpack.c.l.b16 %v1071
        %v1111 = vunpack.c.l.b16 %v1072
        %v1112 = vunpack.c.l.b16 %v1073
        %v1113 = vunpack.c.l.b16 %v1074
        %v1114 = vunpack.c.l.b16 %v1075
        %v1115 = vunpack.c.l.b16 %v1076
        %v1116 = vunpack.c.l.b16 %v1077
        %v1117 = vunpack.c.l.b16 %v1078
        %v1118 = vunpack.c.l.b16 %v1079
        %v1119 = vunpack.c.l.b16 %v1080
        %v1120 = vunpack.c.l.b16 %v1081
        %v1121 = vunpack.c.l.b16 %v1082
        %v1122 = vpack.c.b16 %v1107, %v1106
        %v1123 = vpack.c.b16 %v1109, %v1108
        %v1124 = vpack.c.b16 %v1111, %v1110
        %v1125 = vpack.c.b16 %v1113, %v1112
        %v1126 = vpack.c.b16 %v1115, %v1114
        %v1127 = vpack.c.b16 %v1117, %v1116
        %v1128 = vpack.c.b16 %v1119, %v1118
        %v1129 = vpack.c.b16 %v1121, %v1120
        %1138 = vmatprep.subr.bf16.mxu0 0
        %1139 = vmatpush1.bf16.msra.mxu0 %v1122
        %1140 = vmatprep.subr.bf16.mxu0 0
        %1141 = vmatpush1.bf16.msra.mxu0 %v1123
        %1142 = vmatprep.subr.bf16.mxu0 0
        %1143 = vmatpush1.bf16.msra.mxu0 %v1124
        %1144 = vmatprep.subr.bf16.mxu0 0
        %1145 = vmatpush1.bf16.msra.mxu0 %v1125
        %1146 = vmatprep.subr.bf16.mxu0 0
        %1147 = vmatpush1.bf16.msra.mxu0 %v1126
        %1148 = vmatprep.subr.bf16.mxu0 0
        %1149 = vmatpush1.bf16.msra.mxu0 %v1127
        %1150 = vmatprep.subr.bf16.mxu0 0
        %1151 = vmatpush1.bf16.msra.mxu0 %v1128
        %1152 = vmatprep.subr.bf16.mxu0 0
        %1153 = vmatpush1.bf16.msra.mxu0 %v1129
        %1154 = vmatprep.subr.bf16.mxu0 0
        %1155 = vmatpush1.bf16.msra.mxu0 0
        %1156 = vmatprep.subr.bf16.mxu0 0
        %1157 = vmatpush1.bf16.msra.mxu0 0
        %1158 = vmatprep.subr.bf16.mxu0 0
        %1159 = vmatpush1.bf16.msra.mxu0 0
        %1160 = vmatprep.subr.bf16.mxu0 0
        %1161 = vmatpush1.bf16.msra.mxu0 0
        %1162 = vmatprep.subr.bf16.mxu0 0
        %1163 = vmatpush1.bf16.msra.mxu0 0
        %1164 = vmatprep.subr.bf16.mxu0 0
        %1165 = vmatpush1.bf16.msra.mxu0 0
        %1166 = vmatprep.subr.bf16.mxu0 0
        %1167 = vmatpush1.bf16.msra.mxu0 0
        %1168 = vmatprep.subr.bf16.mxu0 0
        %1169 = vmatpush1.bf16.msra.mxu0 0
        %1170 = vmatprep.mubr.bf16.mxu0 0
        %1171 = vmatmul.mubr.bf16.gmra.mrb[0].mxu0 %v1051
        %v1172 = vpop.f32.mrb[0].mxu0
        %v1173 = vadd.f32 %v1088, %v1172
        %v1174 = vpop.f32.mrb[0].mxu0
        %v1175 = vpop.f32.mrb[0].mxu0
        %v1176 = vadd.f32 %v1088, %v1175
        %v1177 = vpop.f32.mrb[0].mxu0
        %1178 = vmatprep.mubr.bf16.mxu0 0
        %1179 = vmatmul.mubr.bf16.gmra.mrb[0].mxu0 %v1052
        %v1180 = vpop.f32.mrb[0].mxu0
        %v1181 = vadd.f32 %v1088, %v1180
        %v1182 = vpop.f32.mrb[0].mxu0
        %v1183 = vpop.f32.mrb[0].mxu0
        %v1184 = vadd.f32 %v1088, %v1183
        %v1185 = vpop.f32.mrb[0].mxu0
        %1186 = vmatprep.mubr.bf16.mxu0 0
        %1187 = vmatmul.mubr.bf16.gmra.mrb[0].mxu0 %v1053
        %v1188 = vpop.f32.mrb[0].mxu0
        %v1189 = vadd.f32 %v1088, %v1188
        %v1190 = vpop.f32.mrb[0].mxu0
        %v1191 = vpop.f32.mrb[0].mxu0
        %v1192 = vadd.f32 %v1088, %v1191
        %v1193 = vpop.f32.mrb[0].mxu0
        %1194 = vmatprep.mubr.bf16.mxu0 0
        %1195 = vmatmul.mubr.bf16.gmra.mrb[0].mxu0 %v1054
        %v1196 = vpop.f32.mrb[0].mxu0
        %v1197 = vadd.f32 %v1088, %v1196
        %v1198 = vpop.f32.mrb[0].mxu0
        %v1199 = vpop.f32.mrb[0].mxu0
        %v1200 = vadd.f32 %v1088, %v1199
        %v1201 = vpop.f32.mrb[0].mxu0
        %1202 = vmatprep.mubr.bf16.mxu0 0
        %1203 = vmatmul.mubr.bf16.gmra.mrb[0].mxu0 %v1055
        %v1204 = vpop.f32.mrb[0].mxu0
        %v1205 = vadd.f32 %v1088, %v1204
        %v1206 = vpop.f32.mrb[0].mxu0
        %v1207 = vpop.f32.mrb[0].mxu0
        %v1208 = vadd.f32 %v1088, %v1207
        %v1209 = vpop.f32.mrb[0].mxu0
        %1210 = vmatprep.mubr.bf16.mxu0 0
        %1211 = vmatmul.mubr.bf16.gmra.mrb[0].mxu0 %v1056
        %v1212 = vpop.f32.mrb[0].mxu0
        %v1213 = vadd.f32 %v1088, %v1212
        %v1214 = vpop.f32.mrb[0].mxu0
        %v1215 = vpop.f32.mrb[0].mxu0
        %v1216 = vadd.f32 %v1088, %v1215
        %v1217 = vpop.f32.mrb[0].mxu0
        %1218 = vmatprep.mubr.bf16.mxu0 0
        %1219 = vmatmul.mubr.bf16.gmra.mrb[0].mxu0 %v1057
        %v1220 = vpop.f32.mrb[0].mxu0
        %v1221 = vadd.f32 %v1088, %v1220
        %v1222 = vpop.f32.mrb[0].mxu0
        %v1223 = vpop.f32.mrb[0].mxu0
        %v1224 = vadd.f32 %v1088, %v1223
        %v1225 = vpop.f32.mrb[0].mxu0
        %1226 = vmatprep.mubr.bf16.mxu0 0
        %1227 = vmatmul.mubr.bf16.gmra.mrb[0].mxu0 %v1058
        %v1228 = vpop.f32.mrb[0].mxu0
        %v1229 = vadd.f32 %v1088, %v1228
        %v1230 = vpop.f32.mrb[0].mxu0
        %v1231 = vpop.f32.mrb[0].mxu0
        %v1232 = vadd.f32 %v1088, %v1231
        %v1233 = vpop.f32.mrb[0].mxu0
        %1234 = vmatprep.mubr.bf16.mxu0 0
        %1235 = vmatmul.mubr.bf16.gmra.mrb[0].mxu0 %v1059
        %v1236 = vpop.f32.mrb[0].mxu0
        %v1237 = vadd.f32 %v1088, %v1236
        %v1238 = vpop.f32.mrb[0].mxu0
        %v1239 = vpop.f32.mrb[0].mxu0
        %v1240 = vadd.f32 %v1088, %v1239
        %v1241 = vpop.f32.mrb[0].mxu0
        %1242 = vmatprep.mubr.bf16.mxu0 0
        %1243 = vmatmul.mubr.bf16.gmra.mrb[0].mxu0 %v1060
        %v1244 = vpop.f32.mrb[0].mxu0
        %v1245 = vadd.f32 %v1088, %v1244
        %v1246 = vpop.f32.mrb[0].mxu0
        %v1247 = vpop.f32.mrb[0].mxu0
        %v1248 = vadd.f32 %v1088, %v1247
        %v1249 = vpop.f32.mrb[0].mxu0
        %1250 = vmatprep.mubr.bf16.mxu0 0
        %1251 = vmatmul.mubr.bf16.gmra.mrb[0].mxu0 %v1061
        %v1252 = vpop.f32.mrb[0].mxu0
        %v1253 = vadd.f32 %v1088, %v1252
        %v1254 = vpop.f32.mrb[0].mxu0
        %v1255 = vpop.f32.mrb[0].mxu0
        %v1256 = vadd.f32 %v1088, %v1255
        %v1257 = vpop.f32.mrb[0].mxu0
        %1258 = vmatprep.mubr.bf16.mxu0 0
        %1259 = vmatmul.mubr.bf16.gmra.mrb[0].mxu0 %v1062
        %v1260 = vpop.f32.mrb[0].mxu0
        %v1261 = vadd.f32 %v1088, %v1260
        %v1262 = vpop.f32.mrb[0].mxu0
        %v1263 = vpop.f32.mrb[0].mxu0
        %v1264 = vadd.f32 %v1088, %v1263
        %v1265 = vpop.f32.mrb[0].mxu0
        %1266 = vmatprep.mubr.bf16.mxu0 0
        %1267 = vmatmul.mubr.bf16.gmra.mrb[0].mxu0 %v1063
        %v1268 = vpop.f32.mrb[0].mxu0
        %v1269 = vadd.f32 %v1088, %v1268
        %v1270 = vpop.f32.mrb[0].mxu0
        %v1271 = vpop.f32.mrb[0].mxu0
        %v1272 = vadd.f32 %v1088, %v1271
        %v1273 = vpop.f32.mrb[0].mxu0
        %1274 = vmatprep.mubr.bf16.mxu0 0
        %1275 = vmatmul.mubr.bf16.gmra.mrb[0].mxu0 %v1064
        %v1276 = vpop.f32.mrb[0].mxu0
        %v1277 = vadd.f32 %v1088, %v1276
        %v1278 = vpop.f32.mrb[0].mxu0
        %v1279 = vpop.f32.mrb[0].mxu0
        %v1280 = vadd.f32 %v1088, %v1279
        %v1281 = vpop.f32.mrb[0].mxu0
        %1282 = vmatprep.mubr.bf16.mxu0 0
        %1283 = vmatmul.mubr.bf16.gmra.mrb[0].mxu0 %v1065
        %v1284 = vpop.f32.mrb[0].mxu0
        %v1285 = vadd.f32 %v1088, %v1284
        %v1286 = vpop.f32.mrb[0].mxu0
        %v1287 = vpop.f32.mrb[0].mxu0
        %v1288 = vadd.f32 %v1088, %v1287
        %v1289 = vpop.f32.mrb[0].mxu0
        %1290 = vmatprep.mubr.bf16.mxu0 0
        %1291 = vmatmul.mubr.bf16.gmra.mrb[0].mxu0 %v1066
        %v1292 = vpop.f32.mrb[0].mxu0
        %v1293 = vadd.f32 %v1088, %v1292
        %v1294 = vpop.f32.mrb[0].mxu0
        %v1295 = vpop.f32.mrb[0].mxu0
        %v1296 = vadd.f32 %v1088, %v1295
        %v1297 = vpop.f32.mrb[0].mxu0
        %1298 = vdwg.mxu0
        %v1299 = vmax.f32 %v1173, 0.0
        %v1300 = vmax.f32 %v1176, 0.0
        %v1301 = vmax.f32 %v1181, 0.0
        %v1302 = vmax.f32 %v1184, 0.0
        %v1303 = vmax.f32 %v1189, 0.0
        %v1304 = vmax.f32 %v1192, 0.0
        %v1305 = vmax.f32 %v1197, 0.0
        %v1306 = vmax.f32 %v1200, 0.0
        %v1307 = vmax.f32 %v1205, 0.0
        %v1308 = vmax.f32 %v1208, 0.0
        %v1309 = vmax.f32 %v1213, 0.0
        %v1310 = vmax.f32 %v1216, 0.0
        %v1311 = vmax.f32 %v1221, 0.0
        %v1312 = vmax.f32 %v1224, 0.0
        %v1313 = vmax.f32 %v1229, 0.0
        %v1314 = vmax.f32 %v1232, 0.0
        %v1315 = vmax.f32 %v1237, 0.0
        %v1316 = vmax.f32 %v1240, 0.0
        %v1317 = vmax.f32 %v1245, 0.0
        %v1318 = vmax.f32 %v1248, 0.0
        %v1319 = vmax.f32 %v1253, 0.0
        %v1320 = vmax.f32 %v1256, 0.0
        %v1321 = vmax.f32 %v1261, 0.0
        %v1322 = vmax.f32 %v1264, 0.0
        %v1323 = vmax.f32 %v1269, 0.0
        %v1324 = vmax.f32 %v1272, 0.0
        %v1325 = vmax.f32 %v1277, 0.0
        %v1326 = vmax.f32 %v1280, 0.0
        %v1327 = vmax.f32 %v1285, 0.0
        %v1328 = vmax.f32 %v1288, 0.0
        %v1329 = vmax.f32 %v1293, 0.0
        %v1330 = vmax.f32 %v1296, 0.0
        %v1331 = vld [vmem:[%s4] sm:$0xf]
        %v1332 = vpack.c.bf16 %v1300, %v1299
        %v1333 = vpack.c.bf16 %v1302, %v1301
        %v1334 = vpack.c.bf16 %v1304, %v1303
        %v1335 = vpack.c.bf16 %v1306, %v1305
        %v1336 = vpack.c.bf16 %v1308, %v1307
        %v1337 = vpack.c.bf16 %v1310, %v1309
        %v1338 = vpack.c.bf16 %v1312, %v1311
        %v1339 = vpack.c.bf16 %v1314, %v1313
        %v1340 = vpack.c.bf16 %v1316, %v1315
        %v1341 = vpack.c.bf16 %v1318, %v1317
        %v1342 = vpack.c.bf16 %v1320, %v1319
        %v1343 = vpack.c.bf16 %v1322, %v1321
        %v1344 = vpack.c.bf16 %v1324, %v1323
        %v1345 = vpack.c.bf16 %v1326, %v1325
        %v1346 = vpack.c.bf16 %v1328, %v1327
        %v1347 = vpack.c.bf16 %v1330, %v1329
        %1348 = vmatprep.subr.bf16.mxu0 0
        %1349 = vmatpush1.bf16.xpose.msra.mxu0 %v1332
        %1350 = vmatprep.subr.bf16.mxu0 0
        %1351 = vmatpush1.bf16.xpose.msra.mxu0 %v1333
        %1352 = vmatprep.subr.bf16.mxu0 0
        %1353 = vmatpush1.bf16.xpose.msra.mxu0 %v1334
        %1354 = vmatprep.subr.bf16.mxu0 0
        %1355 = vmatpush1.bf16.xpose.msra.mxu0 %v1335
        %1356 = vmatprep.subr.bf16.mxu0 0
        %1357 = vmatpush1.bf16.xpose.msra.mxu0 %v1336
        %1358 = vmatprep.subr.bf16.mxu0 0
        %1359 = vmatpush1.bf16.xpose.msra.mxu0 %v1337
        %1360 = vmatprep.subr.bf16.mxu0 0
        %1361 = vmatpush1.bf16.xpose.msra.mxu0 %v1338
        %1362 = vmatprep.subr.bf16.mxu0 0
        %1363 = vmatpush1.bf16.xpose.msra.mxu0 %v1339
        %1364 = vmatprep.subr.bf16.mxu0 0
        %1365 = vmatpush1.bf16.xpose.msra.mxu0 %v1340
        %1366 = vmatprep.subr.bf16.mxu0 0
        %1367 = vmatpush1.bf16.xpose.msra.mxu0 %v1341
        %1368 = vmatprep.subr.bf16.mxu0 0
        %1369 = vmatpush1.bf16.xpose.msra.mxu0 %v1342
        %1370 = vmatprep.subr.bf16.mxu0 0
        %1371 = vmatpush1.bf16.xpose.msra.mxu0 %v1343
        %1372 = vmatprep.subr.bf16.mxu0 0
        %1373 = vmatpush1.bf16.xpose.msra.mxu0 %v1344
        %1374 = vmatprep.subr.bf16.mxu0 0
        %1375 = vmatpush1.bf16.xpose.msra.mxu0 %v1345
        %1376 = vmatprep.subr.bf16.mxu0 0
        %1377 = vmatpush1.bf16.xpose.msra.mxu0 %v1346
        %1378 = vmatprep.subr.bf16.mxu0 0
        %1379 = vmatpush1.bf16.xpose.msra.mxu0 %v1347
        %1380 = vmatprep.mubr.bf16.mxu0 0
        %1381 = vmatmul.mubr.bf16.gmra.mrb[0].mxu0 %v1331
        %v1382 = vpop.f32.mrb[0].mxu0
        %v1383 = vadd.f32 0.0, %v1382
        %v1384 = vpop.f32.mrb[0].mxu0
        %v1385 = vadd.f32 0.0, %v1384
        %v1386 = vpop.f32.mrb[0].mxu0
        %v1387 = vpop.f32.mrb[0].mxu0
        %1388 = vdwg.mxu0
        %v1389 = vld [vmem:[%s6] sm:$0x3]
        %1391 = vset.pattern.permute.xlu0 0
        %1392 = vperm.xlu0 %1391, %v1389
        %v1393 = vpop.permute.xlu0 %1392
        %v1395 = vadd.f32 %v1383, %v1393
        %v1396 = vadd.f32 %v1385, %v1393
        %v1399 = vcombine.low %v1395, %v1396
        %v1401 = vunpack.c.l.s4 1983009808
        %v1402 = vunpack.c.0.s8 %v1401
        %v1403 = vlaneseq
        %v1404 = vshrl.u32 %v1403, 7
        %v1405 = vsub.s32 %v1402, %v1404
        %v1406 = vrot.slane %v1399, %v1405
        %1408 = vst [vmem:[%s284] sm:$0xf] %v1406
        %s1409 = sand.u32 %s181, 1
        %s1410 = scalar_lea.sflag [#allocation3], %s1409
        %s1411 = sand.u32 %s181, 1
        %s1412 = smul.addr %s1411, 4
        %s1413 = scalar_lea.vmem [#allocation2], %s1412
        // Predicated region
        $region49: #{encoder_forward.1} parent=47 // pred_check
          %p1414 = pneg %p191
        $region50: #{encoder_forward.1} parent=47 // pred_check_branch
          %1416 = sbr.rel (%p1414) target = $region52
        $region51: #{encoder_forward.1} parent=47 // pred_region
          %s1417 = smul.u32 2, %s21
          %s1419 = ssub.s32 64, 64
          %1420 = vsyncadd %s1410, %s1419
          %s1421 = smul.addr %s1417, 32
          %s1422 = scalar_lea.hbm %s7, %s1421
          %s1424 = sshll.u32 %s1413, 4
          %s1425 = int_to_ptr.vmem [resolvable:$true] %s1424
          %1427 = dma.vmem_to_hbm [thread:$0]  %s1425, 64, %s1422, %s1410
        $region52: #{encoder_forward.1} parent=47 // pred_fallthru
          _
      $region48: #{encoder_forward.1} parent=5 // pred_fallthru
        _
      %p1428 = scmp.le.s32.totalorder 2, %s16
      // Predicated region
      $region53: #{encoder_forward.1} parent=5 // pred_check
        %p1429 = pneg %p1428
      $region54: #{encoder_forward.1} parent=5 // pred_check_branch
        %1431 = sbr.rel (%p1429) target = $region56
      $region55: #{encoder_forward.1} parent=5 // pred_region
        %s1432 = ssub.s32 %s16, 2
        // Predicated region
        $region57: #{encoder_forward.1} parent=55 // pred_check
          %p1433 = pneg %p197
        $region58: #{encoder_forward.1} parent=55 // pred_check_branch
          %1435 = sbr.rel (%p1433) target = $region60
        $region59: #{encoder_forward.1} parent=55 // pred_region
          %s1436 = sand.u32 %s182, 1
          %s1437 = scalar_lea.sflag [#allocation3], %s1436
          %s1438 = sand.u32 %s182, 1
          %s1439 = smul.addr %s1438, 4
          %s1440 = scalar_lea.vmem [#allocation2], %s1439
          %1441 = dma.done %s1437, 64
        $region60: #{encoder_forward.1} parent=55 // pred_fallthru
          _
      $region56: #{encoder_forward.1} parent=5 // pred_fallthru
        _
    $region6: #{encoder_forward.1} parent=1 // loop_footer
      %s20 = sadd.s32 1, %s16
    $region7: #{encoder_forward.1} parent=1 // loop_footer_branch
      %15 = sbr.rel target = $region3
    $region8: #{encoder_forward.1} parent=1 // loop_exit
      _
    %1442 = vsyncpa [#allocation3], 1
    %s1443 = scalar_lea.sflag [#allocation3], 1
    %1444 = vsyncpa %s1443, 1

</llo_original>
